<compile_context>
chip_gen: v6e
topology: v6e:2x2x1
jax: 0.10.0
libtpu: 0.0.40
codegen_flags: <defaults>
</compile_context>

<pallas_src>
import functools

import jax
import jax.numpy as jnp
from jax import lax
from jax.experimental import pallas as pl
from jax.experimental.pallas import tpu as pltpu


def dwconv_kernel(x_ref, mask_ref, w_ref, o_ref, im2col_ref,
                  *, NB, Cin, W, HW, HWp):
    """One batch strip (NB images) per grid step.

    x_ref      : (NB*Cin,  HWp)       activations; row = (n, ci), lane = pixel
    mask_ref   : (9, HWp)             0/1 boundary masks per 3x3 tap
    w_ref      : (Cout, 9*Cin+1)      fused weight: scale*w_pw*w_dw per
                                      (tap, ci) column + folded shift column
    o_ref      : (NB*Cout, HWp)
    im2col_ref : (NB*(9*Cin+1), HWp)  VMEM scratch holding the im2col stack
    """
    K = 9 * Cin + 1
    Cout = w_ref.shape[0]

    x = x_ref[...]                                   # (NB*Cin, HWp)
    masks = mask_ref[...]                            # (9, HWp)

    # ---- depthwise 3x3 taps: lane rolls (XLU) + one boundary-mask mul (VPU)
    for oy in (-1, 0, 1):
        for ox in (-1, 0, 1):
            k = (oy + 1) * 3 + (ox + 1)              # tap index, row-major 3x3
            s = oy * W + ox                          # flat source offset
            # tap[p] = x[p + s]  (circular; wrapped lanes zeroed by the mask)
            tap = x if s == 0 else pltpu.roll(x, shift=(-s) % HWp, axis=1)
            if not (s == 0 and HWp == HW):           # center tap needs no mask
                tap = tap * masks[k:k + 1, :]        # zero out-of-image taps
            for n in range(NB):                      # image-major im2col rows
                chunk = tap if NB == 1 else tap[n * Cin:(n + 1) * Cin, :]
                row0 = n * K + k * Cin
                im2col_ref[row0:row0 + Cin, :] = chunk

    # ---- fused depthwise+pointwise+BN: one MXU matmul per image, then ReLU
    ones = jnp.ones((1, HWp), dtype=x.dtype)         # multiplies shift column
    w = w_ref[...]                                   # (Cout, K)
    for n in range(NB):
        im2col_ref[n * K + 9 * Cin:(n + 1) * K, :] = ones
        y = jnp.dot(w, im2col_ref[n * K:(n + 1) * K, :],
                    preferred_element_type=jnp.float32)       # (Cout, HWp)
        o_ref[n * Cout:(n + 1) * Cout, :] = \
            jnp.maximum(y, 0.0).astype(o_ref.dtype)


def dwconv_forward(x_nchw, params, *, batch_block=None,
                   compute_dtype=jnp.float32):
    """x_nchw: (N, Cin, H, W) float32 -> (N, Cout, H, W) float32."""
    w_dw = params['w_dw']          # (Cin, 1, 3, 3)   PyTorch depthwise layout
    b_dw = params['b_dw']          # (Cin,)
    w_pw = params['w_pw']          # (Cout, Cin, 1, 1)
    b_pw = params['b_pw']          # (Cout,)
    gamma = params['bn_gamma']     # (Cout,)
    beta = params['bn_beta']       # (Cout,)
    mean = params['bn_mean']       # (Cout,)
    var = params['bn_var']         # (Cout,)
    eps = params['bn_eps']

    N, Cin, H, W = x_nchw.shape
    Cout = w_pw.shape[0]
    HW = H * W
    HWp = ((HW + 127) // 128) * 128                  # lane-dense pixel axis
    K = 9 * Cin + 1

    itemsize = jnp.dtype(compute_dtype).itemsize
    per_image_bytes = (Cin * HWp * itemsize          # input rows
                       + Cout * HWp * 4              # output rows (f32)
                       + K * HWp * itemsize)         # im2col scratch rows

    if batch_block is None:
        # Several grid steps (pipelining overlap + v7x dual-TC sharding of the
        # "parallel" axis), strip size capped so double-buffered blocks fit
        # comfortably in VMEM on every generation (incl. v7x's 64 MiB).
        NB = max(1, N // 8)
        while N % NB:
            NB -= 1
        while NB > 1 and 2 * NB * per_image_bytes > (16 << 20):
            NB -= 1
            while N % NB:
                NB -= 1
    else:
        NB = batch_block
    assert N % NB == 0, "batch_block must divide N"

    # ---- glue: FREE contiguous reshapes + small fused-weight repacking ----
    x = x_nchw.reshape(N, Cin, HW).astype(compute_dtype)
    if HWp != HW:
        x = jnp.pad(x, ((0, 0), (0, 0), (0, HWp - HW)))
    x = x.reshape(N // NB, NB * Cin, HWp)            # strip-major, contiguous

    wdw2 = w_dw.reshape(Cin, 9)                      # tap k = 3*di + dj
    wpw2 = w_pw[:, :, 0, 0]                          # (Cout, Cin)
    scale = gamma / jnp.sqrt(var + eps)              # (Cout,)
    # fused[o, k*Cin + c] = scale[o] * w_pw[o, c] * w_dw[c, k]
    fused = (scale[:, None, None] * wpw2[:, None, :]
             * jnp.transpose(wdw2)[None, :, :])      # (Cout, 9, Cin)
    shift = scale * (wpw2 @ b_dw + b_pw - mean) + beta
    w_full = jnp.concatenate([fused.reshape(Cout, 9 * Cin), shift[:, None]],
                             axis=1).astype(compute_dtype)     # (Cout, K)

    # Boundary masks per tap (constant-folded by XLA); also zero lane padding.
    p = jnp.arange(HWp, dtype=jnp.int32)
    rr, cc = p // W, p % W
    in_img = p < HW
    mask_list = []
    for oy in (-1, 0, 1):
        for ox in (-1, 0, 1):
            mask_list.append(in_img & (rr + oy >= 0) & (rr + oy < H)
                             & (cc + ox >= 0) & (cc + ox < W))
    tap_masks = jnp.stack(mask_list, 0).astype(compute_dtype)  # (9, HWp)

    kernel = functools.partial(dwconv_kernel, NB=NB, Cin=Cin, W=W,
                               HW=HW, HWp=HWp)

    small = Cout * K * itemsize + 9 * HWp * itemsize
    est = 2 * NB * per_image_bytes + small           # double-buffered blocks
    vmem_limit = int(min(max(2 * est, 32 << 20), 48 << 20))

    out = pl.pallas_call(
        kernel,
        out_shape=jax.ShapeDtypeStruct((N // NB, NB * Cout, HWp), jnp.float32),
        grid_spec=pltpu.PrefetchScalarGridSpec(
            num_scalar_prefetch=0,
            grid=(N // NB,),
            in_specs=[
                pl.BlockSpec((None, NB * Cin, HWp), lambda b: (b, 0, 0)),
                pl.BlockSpec((9, HWp), lambda b: (0, 0)),
                pl.BlockSpec((Cout, K), lambda b: (0, 0)),
            ],
            out_specs=pl.BlockSpec((None, NB * Cout, HWp),
                                   lambda b: (b, 0, 0)),
            scratch_shapes=[pltpu.VMEM((NB * K, HWp), compute_dtype)],
        ),
        compiler_params=pltpu.CompilerParams(
            dimension_semantics=("parallel",),
            vmem_limit_bytes=vmem_limit),
    )(x, tap_masks, w_full)

    out = out.reshape(N, Cout, HWp)                  # free reshape
    if HWp != HW:
        out = out[:, :, :HW]
    return out.reshape(N, Cout, H, W)


def dwconv_reference(x_nchw, params):
    """Pure-JAX (lax.conv) reference for correctness checking."""
    w_dw = params['w_dw']
    b_dw = params['b_dw']
    w_pw = params['w_pw']
    b_pw = params['b_pw']
    Cin = w_dw.shape[0]
    dn = lax.conv_dimension_numbers(x_nchw.shape, w_dw.shape,
                                    ('NCHW', 'OIHW', 'NCHW'))
    out = lax.conv_general_dilated(x_nchw, w_dw, (1, 1), ((1, 1), (1, 1)),
                                   dimension_numbers=dn,
                                   feature_group_count=Cin,
                                   precision=lax.Precision.HIGHEST)
    out = out + b_dw.reshape(1, Cin, 1, 1)
    dn2 = lax.conv_dimension_numbers(out.shape, w_pw.shape,
                                     ('NCHW', 'OIHW', 'NCHW'))
    out = lax.conv_general_dilated(out, w_pw, (1, 1), ((0, 0), (0, 0)),
                                   dimension_numbers=dn2,
                                   precision=lax.Precision.HIGHEST)
    out = out + b_pw.reshape(1, -1, 1, 1)
    scale = params['bn_gamma'] / jnp.sqrt(params['bn_var'] + params['bn_eps'])
    out = (out - params['bn_mean'].reshape(1, -1, 1, 1)) \
        * scale.reshape(1, -1, 1, 1) + params['bn_beta'].reshape(1, -1, 1, 1)
    return jnp.maximum(out, 0.0)


if __name__ == "__main__":
    N, Cin, Cout, H, W = 2, 4, 8, 16, 16

    key = jax.random.PRNGKey(0)
    keys = jax.random.split(key, 9)
    params = {
        'w_dw': jax.random.normal(keys[0], (Cin, 1, 3, 3), jnp.float32) * 0.2,
        'b_dw': jax.random.normal(keys[1], (Cin,), jnp.float32) * 0.1,
        'w_pw': jax.random.normal(keys[2], (Cout, Cin, 1, 1), jnp.float32) * 0.2,
        'b_pw': jax.random.normal(keys[3], (Cout,), jnp.float32) * 0.1,
        'bn_gamma': 1.0 + 0.1 * jax.random.normal(keys[4], (Cout,), jnp.float32),
        'bn_beta': 0.1 * jax.random.normal(keys[5], (Cout,), jnp.float32),
        'bn_mean': 0.05 * jax.random.normal(keys[6], (Cout,), jnp.float32),
        'bn_var': 1.0 + 0.1 * jnp.abs(jax.random.normal(keys[7], (Cout,), jnp.float32)),
        'bn_eps': 1e-5,
    }

    x = jax.random.normal(keys[8], (N, Cin, H, W), jnp.float32)

    out = jax.block_until_ready(dwconv_forward(x, params))
    ref = jax.block_until_ready(dwconv_reference(x, params))

    assert out.shape == (N, Cout, H, W)
    err = float(jnp.max(jnp.abs(out - ref)))
    assert err < 1e-3, f"mismatch vs lax.conv reference: {err}"

    print("KERNEL_OK")
</pallas_src>

<mosaic_0001>
module attributes {stable_mosaic.version = 11 : i64} {
  func.func @dwconv_kernel(%arg0: i32, %arg1: memref<1x4x256xf32, #tpu.memory_space<vmem>>, %arg2: memref<9x256xf32, #tpu.memory_space<vmem>>, %arg3: memref<8x37xf32, #tpu.memory_space<vmem>>, %arg4: memref<1x8x256xf32, #tpu.memory_space<vmem>>, %arg5: memref<37x256xf32, #tpu.memory_space<vmem>>) attributes {dimension_semantics = [#tpu.dimension_semantics<parallel>], iteration_bounds = array<i64: 2>, scalar_prefetch = 0 : i64, scratch_operands = 1 : i64, tpu.core_type = #tpu.core_type<tc>, window_params = [{transform_indices = @transform_0, window_bounds = array<i64: 1, 4, 256>}, {pipeline_mode = #tpu.pipeline_mode<synchronous>, transform_indices = @transform_1, window_bounds = array<i64: 9, 256>}, {pipeline_mode = #tpu.pipeline_mode<synchronous>, transform_indices = @transform_2, window_bounds = array<i64: 8, 37>}, {transform_indices = @transform_3, window_bounds = array<i64: 1, 8, 256>}]} {
    %c0 = arith.constant 0 : index
    %c0_0 = arith.constant 0 : index
    %c0_1 = arith.constant 0 : index
    %0 = vector.load %arg1[%c0, %c0_0, %c0_1] : memref<1x4x256xf32, #tpu.memory_space<vmem>>, vector<1x4x256xf32>
    %1 = vector.shape_cast %0 : vector<1x4x256xf32> to vector<4x256xf32>
    %c0_2 = arith.constant 0 : index
    %c0_3 = arith.constant 0 : index
    %2 = vector.load %arg2[%c0_2, %c0_3] : memref<9x256xf32, #tpu.memory_space<vmem>>, vector<9x256xf32>
    %c17_i32 = arith.constant 17 : i32
    %3 = tpu.dynamic_rotate %1 by %c17_i32 dim 1 : vector<4x256xf32>, i32 -> vector<4x256xf32>
    %4 = vector.extract_strided_slice %2 {offsets = [0, 0], sizes = [1, 256], strides = [1, 1]} : vector<9x256xf32> to vector<1x256xf32>
    %5 = vector.broadcast %4 : vector<1x256xf32> to vector<4x256xf32>
    %6 = arith.mulf %3, %5 : vector<4x256xf32>
    %c0_4 = arith.constant 0 : index
    %c0_5 = arith.constant 0 : index
    %7 = vector.load %arg5[%c0_4, %c0_5] : memref<37x256xf32, #tpu.memory_space<vmem>>, vector<4x256xf32>
    tpu.vector_store %arg5[%c0_4, %c0_5], %6 {strides = array<i32>} : memref<37x256xf32, #tpu.memory_space<vmem>>, vector<4x256xf32>,
    %c16_i32 = arith.constant 16 : i32
    %8 = tpu.dynamic_rotate %1 by %c16_i32 dim 1 : vector<4x256xf32>, i32 -> vector<4x256xf32>
    %9 = vector.extract_strided_slice %2 {offsets = [1, 0], sizes = [1, 256], strides = [1, 1]} : vector<9x256xf32> to vector<1x256xf32>
    %10 = vector.broadcast %9 : vector<1x256xf32> to vector<4x256xf32>
    %11 = arith.mulf %8, %10 : vector<4x256xf32>
    %c4 = arith.constant 4 : index
    %c0_6 = arith.constant 0 : index
    %12 = vector.load %arg5[%c4, %c0_6] : memref<37x256xf32, #tpu.memory_space<vmem>>, vector<4x256xf32>
    tpu.vector_store %arg5[%c4, %c0_6], %11 {strides = array<i32>} : memref<37x256xf32, #tpu.memory_space<vmem>>, vector<4x256xf32>,
    %c15_i32 = arith.constant 15 : i32
    %13 = tpu.dynamic_rotate %1 by %c15_i32 dim 1 : vector<4x256xf32>, i32 -> vector<4x256xf32>
    %14 = vector.extract_strided_slice %2 {offsets = [2, 0], sizes = [1, 256], strides = [1, 1]} : vector<9x256xf32> to vector<1x256xf32>
    %15 = vector.broadcast %14 : vector<1x256xf32> to vector<4x256xf32>
    %16 = arith.mulf %13, %15 : vector<4x256xf32>
    %c8 = arith.constant 8 : index
    %c0_7 = arith.constant 0 : index
    %17 = vector.load %arg5[%c8, %c0_7] : memref<37x256xf32, #tpu.memory_space<vmem>>, vector<4x256xf32>
    tpu.vector_store %arg5[%c8, %c0_7], %16 {strides = array<i32>} : memref<37x256xf32, #tpu.memory_space<vmem>>, vector<4x256xf32>,
    %c1_i32 = arith.constant 1 : i32
    %18 = tpu.dynamic_rotate %1 by %c1_i32 dim 1 : vector<4x256xf32>, i32 -> vector<4x256xf32>
    %19 = vector.extract_strided_slice %2 {offsets = [3, 0], sizes = [1, 256], strides = [1, 1]} : vector<9x256xf32> to vector<1x256xf32>
    %20 = vector.broadcast %19 : vector<1x256xf32> to vector<4x256xf32>
    %21 = arith.mulf %18, %20 : vector<4x256xf32>
    %c12 = arith.constant 12 : index
    %c0_8 = arith.constant 0 : index
    %22 = vector.load %arg5[%c12, %c0_8] : memref<37x256xf32, #tpu.memory_space<vmem>>, vector<4x256xf32>
    tpu.vector_store %arg5[%c12, %c0_8], %21 {strides = array<i32>} : memref<37x256xf32, #tpu.memory_space<vmem>>, vector<4x256xf32>,
    %c16 = arith.constant 16 : index
    %c0_9 = arith.constant 0 : index
    %23 = vector.load %arg5[%c16, %c0_9] : memref<37x256xf32, #tpu.memory_space<vmem>>, vector<4x256xf32>
    tpu.vector_store %arg5[%c16, %c0_9], %1 {strides = array<i32>} : memref<37x256xf32, #tpu.memory_space<vmem>>, vector<4x256xf32>,
    %c255_i32 = arith.constant 255 : i32
    %24 = tpu.dynamic_rotate %1 by %c255_i32 dim 1 : vector<4x256xf32>, i32 -> vector<4x256xf32>
    %25 = vector.extract_strided_slice %2 {offsets = [5, 0], sizes = [1, 256], strides = [1, 1]} : vector<9x256xf32> to vector<1x256xf32>
    %26 = vector.broadcast %25 : vector<1x256xf32> to vector<4x256xf32>
    %27 = arith.mulf %24, %26 : vector<4x256xf32>
    %c20 = arith.constant 20 : index
    %c0_10 = arith.constant 0 : index
    %28 = vector.load %arg5[%c20, %c0_10] : memref<37x256xf32, #tpu.memory_space<vmem>>, vector<4x256xf32>
    tpu.vector_store %arg5[%c20, %c0_10], %27 {strides = array<i32>} : memref<37x256xf32, #tpu.memory_space<vmem>>, vector<4x256xf32>,
    %c241_i32 = arith.constant 241 : i32
    %29 = tpu.dynamic_rotate %1 by %c241_i32 dim 1 : vector<4x256xf32>, i32 -> vector<4x256xf32>
    %30 = vector.extract_strided_slice %2 {offsets = [6, 0], sizes = [1, 256], strides = [1, 1]} : vector<9x256xf32> to vector<1x256xf32>
    %31 = vector.broadcast %30 : vector<1x256xf32> to vector<4x256xf32>
    %32 = arith.mulf %29, %31 : vector<4x256xf32>
    %c24 = arith.constant 24 : index
    %c0_11 = arith.constant 0 : index
    %33 = vector.load %arg5[%c24, %c0_11] : memref<37x256xf32, #tpu.memory_space<vmem>>, vector<4x256xf32>
    tpu.vector_store %arg5[%c24, %c0_11], %32 {strides = array<i32>} : memref<37x256xf32, #tpu.memory_space<vmem>>, vector<4x256xf32>,
    %c240_i32 = arith.constant 240 : i32
    %34 = tpu.dynamic_rotate %1 by %c240_i32 dim 1 : vector<4x256xf32>, i32 -> vector<4x256xf32>
    %35 = vector.extract_strided_slice %2 {offsets = [7, 0], sizes = [1, 256], strides = [1, 1]} : vector<9x256xf32> to vector<1x256xf32>
    %36 = vector.broadcast %35 : vector<1x256xf32> to vector<4x256xf32>
    %37 = arith.mulf %34, %36 : vector<4x256xf32>
    %c28 = arith.constant 28 : index
    %c0_12 = arith.constant 0 : index
    %38 = vector.load %arg5[%c28, %c0_12] : memref<37x256xf32, #tpu.memory_space<vmem>>, vector<4x256xf32>
    tpu.vector_store %arg5[%c28, %c0_12], %37 {strides = array<i32>} : memref<37x256xf32, #tpu.memory_space<vmem>>, vector<4x256xf32>,
    %c239_i32 = arith.constant 239 : i32
    %39 = tpu.dynamic_rotate %1 by %c239_i32 dim 1 : vector<4x256xf32>, i32 -> vector<4x256xf32>
    %40 = vector.extract_strided_slice %2 {offsets = [8, 0], sizes = [1, 256], strides = [1, 1]} : vector<9x256xf32> to vector<1x256xf32>
    %41 = vector.broadcast %40 : vector<1x256xf32> to vector<4x256xf32>
    %42 = arith.mulf %39, %41 : vector<4x256xf32>
    %c32 = arith.constant 32 : index
    %c0_13 = arith.constant 0 : index
    %43 = vector.load %arg5[%c32, %c0_13] : memref<37x256xf32, #tpu.memory_space<vmem>>, vector<4x256xf32>
    tpu.vector_store %arg5[%c32, %c0_13], %42 {strides = array<i32>} : memref<37x256xf32, #tpu.memory_space<vmem>>, vector<4x256xf32>,
    %cst = arith.constant 1.000000e+00 : f32
    %44 = vector.broadcast %cst : f32 to vector<1x256xf32>
    %c0_14 = arith.constant 0 : index
    %c0_15 = arith.constant 0 : index
    %45 = vector.load %arg3[%c0_14, %c0_15] : memref<8x37xf32, #tpu.memory_space<vmem>>, vector<8x37xf32>
    %c36 = arith.constant 36 : index
    %c0_16 = arith.constant 0 : index
    %46 = vector.load %arg5[%c36, %c0_16] : memref<37x256xf32, #tpu.memory_space<vmem>>, vector<1x256xf32>
    tpu.vector_store %arg5[%c36, %c0_16], %44 {strides = array<i32>} : memref<37x256xf32, #tpu.memory_space<vmem>>, vector<1x256xf32>,
    %c0_17 = arith.constant 0 : index
    %c0_18 = arith.constant 0 : index
    %47 = vector.load %arg5[%c0_17, %c0_18] : memref<37x256xf32, #tpu.memory_space<vmem>>, vector<37x256xf32>
    %cst_19 = arith.constant dense<0.000000e+00> : vector<8x256xf32>
    %48 = tpu.matmul %45, %47, %cst_19 {dimension_numbers = #tpu.dot_dimension_numbers<[1], [0], [0], [1], [0, 0, 1, 1], [], []>} : vector<8x37xf32>, vector<37x256xf32>, vector<8x256xf32> -> vector<8x256xf32>
    %cst_20 = arith.constant 0.000000e+00 : f32
    %49 = vector.broadcast %cst_20 : f32 to vector<8x256xf32>
    %50 = arith.maximumf %48, %49 : vector<8x256xf32>
    %c0_21 = arith.constant 0 : index
    %c0_22 = arith.constant 0 : index
    %c0_23 = arith.constant 0 : index
    %51 = vector.load %arg4[%c0_21, %c0_22, %c0_23] : memref<1x8x256xf32, #tpu.memory_space<vmem>>, vector<1x8x256xf32>
    %52 = vector.shape_cast %51 : vector<1x8x256xf32> to vector<8x256xf32>
    %53 = vector.shape_cast %50 : vector<8x256xf32> to vector<1x8x256xf32>
    tpu.vector_store %arg4[%c0_21, %c0_22, %c0_23], %53 {strides = array<i32>} : memref<1x8x256xf32, #tpu.memory_space<vmem>>, vector<1x8x256xf32>,
    return
  }
  func.func @transform_0(%arg0: i32) -> (i32, i32, i32) {
    %c0_i32 = arith.constant 0 : i32
    %c0_i32_0 = arith.constant 0 : i32
    %c0_i32_1 = arith.constant 0 : i32
    return %arg0, %c0_i32, %c0_i32_0 : i32, i32, i32
  }
  func.func @transform_1(%arg0: i32) -> (i32, i32) {
    %c0_i32 = arith.constant 0 : i32
    %c0_i32_0 = arith.constant 0 : i32
    %c0_i32_1 = arith.constant 0 : i32
    return %c0_i32, %c0_i32_0 : i32, i32
  }
  func.func @transform_2(%arg0: i32) -> (i32, i32) {
    %c0_i32 = arith.constant 0 : i32
    %c0_i32_0 = arith.constant 0 : i32
    %c0_i32_1 = arith.constant 0 : i32
    return %c0_i32, %c0_i32_0 : i32, i32
  }
  func.func @transform_3(%arg0: i32) -> (i32, i32, i32) {
    %c0_i32 = arith.constant 0 : i32
    %c0_i32_0 = arith.constant 0 : i32
    %c0_i32_1 = arith.constant 0 : i32
    return %arg0, %c0_i32, %c0_i32_0 : i32, i32, i32
  }
}

</mosaic_0001>

<llo_original>
// kernel: tpu_custom_call.1
$region0: #{tpu_custom_call.1}
  #allocation0 [shape = 'u32[]', space=smem, size = 0x4, offset = 0x4, fixed_abs, tag = 'smem constant byte address 0x4 - core index']
  #allocation1 [shape = 'u32[144,128]{1,0:T(1,128)}', space=vmem, size = 0x12000, scoped, tag = 'internal scratch']
  #allocation2 [shape = 'f32[37,256]{1,0:T(8,128)}', space=vmem, size = 0xa000, scoped, tag = 'scratch operand']
  %s0 = inlined_call_operand.hbm [shape: f32[2,4,256], index: 0, kind: input, shape index: {}]
  %s1 = inlined_call_operand.hbm [shape: f32[9,256], index: 1, kind: input, shape index: {}]
  %s2 = inlined_call_operand.hbm [shape: f32[8,37], index: 2, kind: input, shape index: {}]
  %s3 = inlined_call_operand.hbm [shape: f32[2,8,256], index: 3, kind: output, shape index: {}]
  %s4 = sld [smem:[#allocation0]]
  $region57: #{tpu_custom_call.1} parent=0
    _
  %s6 = ssub.s32 1, %s4
  %s7 = scalar_select 0, %s6, %s4
  $region1: #{tpu_custom_call.1} parent=0
    #allocation3 [shape = 'u8[8192]{0}', space=vmem, size = 0x2000, scoped, tag = 'input window, operand 0']
    #allocation4 [shape = 's32[2]{0}', space=sflag, size = 0x8, scoped, tag = 'scoped memory for tpu_custom_call.1']
    #allocation5 [shape = 's32[2]{0}', space=sflag, size = 0x8, scoped, tag = 'scoped memory for tpu_custom_call.1']
    #allocation6 [shape = 'u8[16384]{0}', space=vmem, size = 0x4000, scoped, tag = 'input window, operand 1, single buffered']
    #allocation7 [shape = 's32[1]{0}', space=sflag, size = 0x4, scoped, tag = 'scoped memory for tpu_custom_call.1']
    #allocation8 [shape = 'u8[4096]{0}', space=vmem, size = 0x1000, scoped, tag = 'input window, operand 2, single buffered']
    #allocation9 [shape = 'u8[16384]{0}', space=vmem, size = 0x4000, scoped, tag = 'output window, operand 0']
    %8 = vsyncpa [#allocation4], 0
    %s9 = scalar_lea.sflag [#allocation4], 1
    %10 = vsyncpa %s9, 0
    %11 = vsyncpa [#allocation7], 0
    %12 = vsyncpa [#allocation5], 0
    %s13 = scalar_lea.sflag [#allocation5], 1
    %14 = vsyncpa %s13, 0
    loop: start=0, step=1, limit=4
    $region2: #{tpu_custom_call.1} parent=1 // loop_pre_header
      _
    $region3: #{tpu_custom_call.1} parent=1 // loop_header
      %s16 = sphi 0, %s20
      %p17 = scmp.ge.s32.totalorder %s16, 4
      %s26 = sphi 0, %s28
      %s29 = sphi 0, %s26
      %s30 = sphi 0, %s29
      %s46 = sphi 0, %s30
      %s50 = sphi 0, %s50
      %s52 = sphi 0, %s50
      %s53 = sphi 0, %s52
      %s67 = sphi 0, %s53
      %s71 = sphi 0, %s71
      %s73 = sphi 0, %s71
      %s74 = sphi 0, %s73
      %s88 = sphi 0, %s74
      %s94 = sphi 0, %s96
      %s97 = sphi 0, %s94
      %s98 = sphi 0, %s97
      %s114 = sphi 0, %s98
    $region4: #{tpu_custom_call.1} parent=1 // loop_header_branch
      %19 = sbr.rel (%p17) target = $region8
    $region5: #{tpu_custom_call.1} parent=1 // loop_body
      %s21 = ssub.s32 %s16, 1
      %s22 = ssub.s32 %s16, 2
      %s23 = sadd.s32 %s16, 1
      %s24 = ssub.s32 %s16, %s23
      %p25 = scmp.eq.s32.totalorder %s24, 0
      %s27 = sadd.s32 %s26, 1
      %s28 = scalar_select %p25, %s26, %s27
      %p31 = pneg %p25
      %p32 = scmp.eq.s32.totalorder %s16, 1
      %p33 = por %p31, %p32
      %p34 = scmp.ne.s32.totalorder %s26, %s29
      %p35 = scmp.eq.s32.totalorder %s16, 0
      %p36 = por %p34, %p35
      %p37 = scmp.ne.s32.totalorder %s26, %s29
      %p38 = scmp.eq.s32.totalorder %s21, 1
      %p39 = por %p37, %p38
      %p40 = scmp.ne.s32.totalorder %s29, %s30
      %p41 = scmp.eq.s32.totalorder %s21, 0
      %p42 = por %p40, %p41
      %p43 = scmp.ne.s32.totalorder %s29, %s30
      %p44 = scmp.eq.s32.totalorder %s22, 1
      %p45 = por %p43, %p44
      %p47 = scmp.ne.s32.totalorder %s30, %s46
      %p48 = scmp.eq.s32.totalorder %s22, 0
      %p49 = por %p47, %p48
      %s51 = sadd.s32 %s50, 1
      %p54 = scmp.eq.s32.totalorder %s16, 1
      %p55 = scmp.ne.s32.totalorder %s50, %s52
      %p56 = scmp.eq.s32.totalorder %s16, 0
      %p57 = por %p55, %p56
      %p58 = scmp.ne.s32.totalorder %s50, %s52
      %p59 = scmp.eq.s32.totalorder %s21, 1
      %p60 = por %p58, %p59
      %p61 = scmp.ne.s32.totalorder %s52, %s53
      %p62 = scmp.eq.s32.totalorder %s21, 0
      %p63 = por %p61, %p62
      %p64 = scmp.ne.s32.totalorder %s52, %s53
      %p65 = scmp.eq.s32.totalorder %s22, 1
      %p66 = por %p64, %p65
      %p68 = scmp.ne.s32.totalorder %s53, %s67
      %p69 = scmp.eq.s32.totalorder %s22, 0
      %p70 = por %p68, %p69
      %s72 = sadd.s32 %s71, 1
      %p75 = scmp.eq.s32.totalorder %s16, 1
      %p76 = scmp.ne.s32.totalorder %s71, %s73
      %p77 = scmp.eq.s32.totalorder %s16, 0
      %p78 = por %p76, %p77
      %p79 = scmp.ne.s32.totalorder %s71, %s73
      %p80 = scmp.eq.s32.totalorder %s21, 1
      %p81 = por %p79, %p80
      %p82 = scmp.ne.s32.totalorder %s73, %s74
      %p83 = scmp.eq.s32.totalorder %s21, 0
      %p84 = por %p82, %p83
      %p85 = scmp.ne.s32.totalorder %s73, %s74
      %p86 = scmp.eq.s32.totalorder %s22, 1
      %p87 = por %p85, %p86
      %p89 = scmp.ne.s32.totalorder %s74, %s88
      %p90 = scmp.eq.s32.totalorder %s22, 0
      %p91 = por %p89, %p90
      %s92 = ssub.s32 %s16, %s23
      %p93 = scmp.eq.s32.totalorder %s92, 0
      %s95 = sadd.s32 %s94, 1
      %s96 = scalar_select %p93, %s94, %s95
      %p99 = pneg %p93
      %p100 = scmp.eq.s32.totalorder %s16, 1
      %p101 = por %p99, %p100
      %p102 = scmp.ne.s32.totalorder %s94, %s97
      %p103 = scmp.eq.s32.totalorder %s16, 0
      %p104 = por %p102, %p103
      %p105 = scmp.ne.s32.totalorder %s94, %s97
      %p106 = scmp.eq.s32.totalorder %s21, 1
      %p107 = por %p105, %p106
      %p108 = scmp.ne.s32.totalorder %s97, %s98
      %p109 = scmp.eq.s32.totalorder %s21, 0
      %p110 = por %p108, %p109
      %p111 = scmp.ne.s32.totalorder %s97, %s98
      %p112 = scmp.eq.s32.totalorder %s22, 1
      %p113 = por %p111, %p112
      %p115 = scmp.ne.s32.totalorder %s98, %s114
      %p116 = scmp.eq.s32.totalorder %s22, 0
      %p117 = por %p115, %p116
      %p118 = scmp.le.s32.totalorder 1, %s16
      %p119 = scmp.lt.s32.totalorder %s16, 3
      %p120 = pnand %p118, %p119
      %p121 = pneg %p120
      // Predicated region
      $region9: #{tpu_custom_call.1} parent=5 // pred_check
        _
      $region10: #{tpu_custom_call.1} parent=5 // pred_check_branch
        %123 = sbr.rel (%p120) target = $region12
      $region11: #{tpu_custom_call.1} parent=5 // pred_region
        %s124 = ssub.s32 %s16, 1
        // Predicated region
        $region13: #{tpu_custom_call.1} parent=11 // pred_check
          %p125 = pneg %p63
        $region14: #{tpu_custom_call.1} parent=11 // pred_check_branch
          %127 = sbr.rel (%p125) target = $region16
        $region15: #{tpu_custom_call.1} parent=11 // pred_region
          %s129 = ssub.s32 512, 512
          %130 = vsyncadd [#allocation7], %s129
          %s131 = sshll.u32 [#allocation6], 4
          %s132 = int_to_ptr.vmem [resolvable:$true] %s131
          %137 = dma.hbm_to_vmem [thread:$0]  %s1, 512, %s132, [#allocation7], 256, 256, 16
        $region16: #{tpu_custom_call.1} parent=11 // pred_fallthru
          _
        // Predicated region
        $region17: #{tpu_custom_call.1} parent=11 // pred_check
          %p138 = pneg %p84
        $region18: #{tpu_custom_call.1} parent=11 // pred_check_branch
          %140 = sbr.rel (%p138) target = $region20
        $region19: #{tpu_custom_call.1} parent=11 // pred_region
          %s142 = ssub.s32 128, 128
          %143 = vsyncadd [#allocation7], %s142
          %s145 = sshll.u32 [#allocation8], 4
          %s146 = int_to_ptr.vmem [resolvable:$true] %s145
          %148 = dma.hbm_to_vmem [thread:$0]  %s2, 128, %s146, [#allocation7]
        $region20: #{tpu_custom_call.1} parent=11 // pred_fallthru
          _
      $region12: #{tpu_custom_call.1} parent=5 // pred_fallthru
        _
      %p149 = scmp.lt.s32.totalorder %s16, 2
      // Predicated region
      $region21: #{tpu_custom_call.1} parent=5 // pred_check
        %p150 = pneg %p149
      $region22: #{tpu_custom_call.1} parent=5 // pred_check_branch
        %152 = sbr.rel (%p150) target = $region24
      $region23: #{tpu_custom_call.1} parent=5 // pred_region
        // Predicated region
        $region25: #{tpu_custom_call.1} parent=23 // pred_check
          %p153 = pneg %p36
        $region26: #{tpu_custom_call.1} parent=23 // pred_check_branch
          %155 = sbr.rel (%p153) target = $region28
        $region27: #{tpu_custom_call.1} parent=23 // pred_region
          %s156 = sand.u32 %s26, 1
          %s157 = scalar_lea.sflag [#allocation4], %s156
          %s158 = sand.u32 %s26, 1
          %s159 = smul.addr %s158, 8
          %s160 = scalar_lea.vmem [#allocation3], %s159
          %s162 = ssub.s32 128, 128
          %163 = vsyncadd %s157, %s162
          %s164 = smul.addr %s16, 2
          %s165 = smul.addr %s164, 64
          %s166 = scalar_lea.hbm %s0, %s165
          %s168 = sshll.u32 %s160, 4
          %s169 = int_to_ptr.vmem [resolvable:$true] %s168
          %171 = dma.hbm_to_vmem [thread:$0]  %s166, 128, %s169, %s157
        $region28: #{tpu_custom_call.1} parent=23 // pred_fallthru
          _
      $region24: #{tpu_custom_call.1} parent=5 // pred_fallthru
        _
      %p172 = scmp.le.s32.totalorder 1, %s16
      %p173 = scmp.lt.s32.totalorder %s16, 3
      %p174 = pnand %p172, %p173
      %p175 = pneg %p174
      // Predicated region
      $region29: #{tpu_custom_call.1} parent=5 // pred_check
        _
      $region30: #{tpu_custom_call.1} parent=5 // pred_check_branch
        %177 = sbr.rel (%p174) target = $region32
      $region31: #{tpu_custom_call.1} parent=5 // pred_region
        %s178 = ssub.s32 %s16, 1
        %s179 = sand.u32 %s29, 1
        %s180 = scalar_lea.sflag [#allocation4], %s179
        %s181 = sand.u32 %s29, 1
        %s182 = smul.addr %s181, 8
        %s183 = scalar_lea.vmem [#allocation3], %s182
        // Predicated region
        $region33: #{tpu_custom_call.1} parent=31 // pred_check
          %p184 = pneg %p42
        $region34: #{tpu_custom_call.1} parent=31 // pred_check_branch
          %186 = sbr.rel (%p184) target = $region36
        $region35: #{tpu_custom_call.1} parent=31 // pred_region
          %187 = dma.done %s180, 128
        $region36: #{tpu_custom_call.1} parent=31 // pred_fallthru
          _
        // Predicated region
        $region37: #{tpu_custom_call.1} parent=31 // pred_check
          %p188 = pneg %p63
        $region38: #{tpu_custom_call.1} parent=31 // pred_check_branch
          %190 = sbr.rel (%p188) target = $region40
        $region39: #{tpu_custom_call.1} parent=31 // pred_region
          %191 = dma.done [#allocation7], 512
        $region40: #{tpu_custom_call.1} parent=31 // pred_fallthru
          _
        // Predicated region
        $region41: #{tpu_custom_call.1} parent=31 // pred_check
          %p192 = pneg %p84
        $region42: #{tpu_custom_call.1} parent=31 // pred_check_branch
          %194 = sbr.rel (%p192) target = $region44
        $region43: #{tpu_custom_call.1} parent=31 // pred_region
          %195 = dma.done [#allocation7], 128
        $region44: #{tpu_custom_call.1} parent=31 // pred_fallthru
          _
        %s196 = sand.u32 %s29, 1
        %s197 = scalar_lea.sflag [#allocation4], %s196
        %s198 = sand.u32 %s29, 1
        %s199 = smul.addr %s198, 8
        %s200 = scalar_lea.vmem [#allocation3], %s199
        %p201 = pneg %p42
        %p202 = pneg %p39
        %p203 = pneg %p63
        %p204 = pneg %p60
        %p205 = pneg %p84
        %p206 = pneg %p81
        %p207 = pneg %p110
        %p208 = pneg %p107
        %s209 = sand.u32 %s97, 1
        %s210 = scalar_lea.sflag [#allocation5], %s209
        %s211 = sand.u32 %s97, 1
        %s212 = smul.addr %s211, 16
        %s213 = scalar_lea.vmem [#allocation9], %s212
        %v214 = vld [vmem:[%s183] sm:$0xff]
        %v215 = vld [vmem:[#allocation6] sm:$0xff]
        %v216 = vld [vmem:[#allocation6 + $0x8] sm:$0xff]
        %v217 = vld [vmem:[#allocation6 + $0x10] sm:$0x1]
        %v218 = vld [vmem:[#allocation6 + $0x18] sm:$0x1]
        %v220 = vcombine.high %v214, %v214
        %222 = vrot.lane.b32.xlu0 %v214, 17
        %v223 = vpop.permute.xlu0 %222
        %224 = vrot.lane.b32.xlu0 %v220, 17
        %v225 = vpop.permute.xlu0 %224
        %v226 = vlaneseq
        %v227 = vand.u32 %v226, 127
        %vm228 = vcmp.lt.s32.totalorder %v227, 17
        %v229 = vsel %vm228, %v223, %v225
        %v230 = vsel %vm228, %v225, %v223
        %v231 = vlaneseq
        %v232 = vshrl.u32 %v231, 7
        %v233 = vsub.s32 0, %v232
        %v234 = vrot.slane %v215, %v233
        %v235 = vlaneseq
        %v236 = vshrl.u32 %v235, 7
        %v237 = vsub.s32 0, %v236
        %v238 = vrot.slane %v216, %v237
        %v239 = vmul.f32 %v230, %v234
        %v240 = vmul.f32 %v229, %v238
        %241 = vst [vmem:[#allocation2] sm:$0xf] %v239
        %242 = vst [vmem:[#allocation2 + $0x8] sm:$0xf] %v240
        %243 = vrot.lane.b32.xlu0 %v214, 16
        %v244 = vpop.permute.xlu0 %243
        %245 = vrot.lane.b32.xlu0 %v220, 16
        %v246 = vpop.permute.xlu0 %245
        %vm247 = vcmp.lt.s32.totalorder %v227, 16
        %v248 = vsel %vm247, %v244, %v246
        %v249 = vsel %vm247, %v246, %v244
        %v250 = vlaneseq
        %v251 = vshrl.u32 %v250, 7
        %v252 = vsub.s32 1, %v251
        %v253 = vrot.slane %v215, %v252
        %v254 = vlaneseq
        %v255 = vshrl.u32 %v254, 7
        %v256 = vsub.s32 1, %v255
        %v257 = vrot.slane %v216, %v256
        %v258 = vmul.f32 %v249, %v253
        %v259 = vmul.f32 %v248, %v257
        %v262 = vrot.slane %v258, 4
        %v263 = vrot.slane %v259, 4
        %266 = vst [vmem:[#allocation2] sm:$0xf0] %v262
        %267 = vst [vmem:[#allocation2 + $0x8] sm:$0xf0] %v263
        %268 = vrot.lane.b32.xlu0 %v214, 15
        %v269 = vpop.permute.xlu0 %268
        %270 = vrot.lane.b32.xlu0 %v220, 15
        %v271 = vpop.permute.xlu0 %270
        %vm272 = vcmp.lt.s32.totalorder %v227, 15
        %v273 = vsel %vm272, %v269, %v271
        %v274 = vsel %vm272, %v271, %v269
        %v275 = vlaneseq
        %v276 = vshrl.u32 %v275, 7
        %v277 = vsub.s32 2, %v276
        %v278 = vrot.slane %v215, %v277
        %v279 = vlaneseq
        %v280 = vshrl.u32 %v279, 7
        %v281 = vsub.s32 2, %v280
        %v282 = vrot.slane %v216, %v281
        %v283 = vmul.f32 %v274, %v278
        %v284 = vmul.f32 %v273, %v282
        %285 = vst [vmem:[#allocation2 + $0x10] sm:$0xf] %v283
        %286 = vst [vmem:[#allocation2 + $0x18] sm:$0xf] %v284
        %287 = vrot.lane.b32.xlu0 %v214, 1
        %v288 = vpop.permute.xlu0 %287
        %289 = vrot.lane.b32.xlu0 %v220, 1
        %v290 = vpop.permute.xlu0 %289
        %vm291 = vcmp.lt.s32.totalorder %v227, 1
        %v292 = vsel %vm291, %v288, %v290
        %v293 = vsel %vm291, %v290, %v288
        %v294 = vlaneseq
        %v295 = vshrl.u32 %v294, 7
        %v296 = vsub.s32 3, %v295
        %v297 = vrot.slane %v215, %v296
        %v298 = vlaneseq
        %v299 = vshrl.u32 %v298, 7
        %v300 = vsub.s32 3, %v299
        %v301 = vrot.slane %v216, %v300
        %v302 = vmul.f32 %v293, %v297
        %v303 = vmul.f32 %v292, %v301
        %v306 = vrot.slane %v302, 4
        %v307 = vrot.slane %v303, 4
        %310 = vst [vmem:[#allocation2 + $0x10] sm:$0xf0] %v306
        %311 = vst [vmem:[#allocation2 + $0x18] sm:$0xf0] %v307
        %312 = vst [vmem:[#allocation2 + $0x20] sm:$0xf] %v214
        %313 = vst [vmem:[#allocation2 + $0x28] sm:$0xf] %v220
        %314 = vrot.lane.b32.xlu0 %v214, 127
        %v315 = vpop.permute.xlu0 %314
        %316 = vrot.lane.b32.xlu0 %v220, 127
        %v317 = vpop.permute.xlu0 %316
        %vm318 = vcmp.lt.s32.totalorder %v227, 127
        %v319 = vsel %vm318, %v315, %v317
        %v320 = vsel %vm318, %v317, %v315
        %v321 = vlaneseq
        %v322 = vshrl.u32 %v321, 7
        %v323 = vsub.s32 5, %v322
        %v324 = vrot.slane %v215, %v323
        %v325 = vlaneseq
        %v326 = vshrl.u32 %v325, 7
        %v327 = vsub.s32 5, %v326
        %v328 = vrot.slane %v216, %v327
        %v329 = vmul.f32 %v319, %v324
        %v330 = vmul.f32 %v320, %v328
        %v333 = vrot.slane %v329, 4
        %v334 = vrot.slane %v330, 4
        %337 = vst [vmem:[#allocation2 + $0x20] sm:$0xf0] %v333
        %338 = vst [vmem:[#allocation2 + $0x28] sm:$0xf0] %v334
        %339 = vrot.lane.b32.xlu0 %v214, 113
        %v340 = vpop.permute.xlu0 %339
        %341 = vrot.lane.b32.xlu0 %v220, 113
        %v342 = vpop.permute.xlu0 %341
        %vm343 = vcmp.lt.s32.totalorder %v227, 113
        %v344 = vsel %vm343, %v340, %v342
        %v345 = vsel %vm343, %v342, %v340
        %v346 = vlaneseq
        %v347 = vshrl.u32 %v346, 7
        %v348 = vsub.s32 6, %v347
        %v349 = vrot.slane %v215, %v348
        %v350 = vlaneseq
        %v351 = vshrl.u32 %v350, 7
        %v352 = vsub.s32 6, %v351
        %v353 = vrot.slane %v216, %v352
        %v354 = vmul.f32 %v344, %v349
        %v355 = vmul.f32 %v345, %v353
        %356 = vst [vmem:[#allocation2 + $0x30] sm:$0xf] %v354
        %357 = vst [vmem:[#allocation2 + $0x38] sm:$0xf] %v355
        %358 = vrot.lane.b32.xlu0 %v214, 112
        %v359 = vpop.permute.xlu0 %358
        %360 = vrot.lane.b32.xlu0 %v220, 112
        %v361 = vpop.permute.xlu0 %360
        %vm362 = vcmp.lt.s32.totalorder %v227, 112
        %v363 = vsel %vm362, %v359, %v361
        %v364 = vsel %vm362, %v361, %v359
        %v365 = vlaneseq
        %v366 = vshrl.u32 %v365, 7
        %v367 = vsub.s32 7, %v366
        %v368 = vrot.slane %v215, %v367
        %v369 = vlaneseq
        %v370 = vshrl.u32 %v369, 7
        %v371 = vsub.s32 7, %v370
        %v372 = vrot.slane %v216, %v371
        %v373 = vmul.f32 %v363, %v368
        %v374 = vmul.f32 %v364, %v372
        %v377 = vrot.slane %v373, 4
        %v378 = vrot.slane %v374, 4
        %381 = vst [vmem:[#allocation2 + $0x30] sm:$0xf0] %v377
        %382 = vst [vmem:[#allocation2 + $0x38] sm:$0xf0] %v378
        %383 = vrot.lane.b32.xlu0 %v214, 111
        %v384 = vpop.permute.xlu0 %383
        %385 = vrot.lane.b32.xlu0 %v220, 111
        %v386 = vpop.permute.xlu0 %385
        %vm387 = vcmp.lt.s32.totalorder %v227, 111
        %v388 = vsel %vm387, %v384, %v386
        %v389 = vsel %vm387, %v386, %v384
        %v390 = vlaneseq
        %v391 = vshrl.u32 %v390, 7
        %v392 = vsub.s32 0, %v391
        %v393 = vrot.slane %v217, %v392
        %v394 = vlaneseq
        %v395 = vshrl.u32 %v394, 7
        %v396 = vsub.s32 0, %v395
        %v397 = vrot.slane %v218, %v396
        %v398 = vmul.f32 %v388, %v393
        %v399 = vmul.f32 %v389, %v397
        %400 = vst [vmem:[#allocation2 + $0x40] sm:$0xf] %v398
        %401 = vst [vmem:[#allocation2 + $0x48] sm:$0xf] %v399
        %v402 = vld [vmem:[#allocation8] sm:$0xff]
        %v403 = vlaneseq
        %vm404 = vcmp.ge.s32.totalorder %v403, 0
        %vm405 = vcmp.lt.s32.totalorder %v403, 256
        %vm406 = vmand %vm404, %vm405
        %s407 = scalar_lea.vmem [#allocation2], 68
        %408 = vst.msk [vmem:[%s407] ss:$8 sm:$0x3] %vm406, 1.0
        %409 = vst.msk [vmem:[%s407] ss:$8 sm:$0x0] %vm406, 1.0
        %v410 = vld [vmem:[#allocation2] sm:$0xff]
        %v411 = vld [vmem:[#allocation2 + $0x8] sm:$0xff]
        %v412 = vld [vmem:[#allocation2 + $0x10] sm:$0xff]
        %v413 = vld [vmem:[#allocation2 + $0x18] sm:$0xff]
        %v414 = vld [vmem:[#allocation2 + $0x20] sm:$0xff]
        %v415 = vld [vmem:[#allocation2 + $0x28] sm:$0xff]
        %v416 = vld [vmem:[#allocation2 + $0x30] sm:$0xff]
        %v417 = vld [vmem:[#allocation2 + $0x38] sm:$0xff]
        %v418 = vld [vmem:[#allocation2 + $0x40] sm:$0x1f]
        %v419 = vld [vmem:[#allocation2 + $0x48] sm:$0x1f]
        %vm420 = vcmask 302080
        %v422 = vsel %vm420, %v402, 0
        %vm424 = vcmask 1044480
        %v426 = vsel %vm424, %v418, 0
        %v429 = vsel %vm424, %v419, 0
        %431 = vmatprep.subr.mxu0 0.0
        %432 = vmatpush1.msra.mxu0 0.0
        %433 = vmatprep.subr.mxu0 0.0
        %434 = vmatpush1.msra.mxu0 0.0
        %435 = vmatprep.subr.mxu0 0.0
        %436 = vmatpush1.msra.mxu0 0.0
        %437 = vmatprep.subr.mxu0 0.0
        %438 = vmatpush1.msra.mxu0 0.0
        %439 = vmatprep.subr.mxu0 0.0
        %440 = vmatpush1.msra.mxu0 0.0
        %441 = vmatprep.subr.mxu0 0.0
        %442 = vmatpush1.msra.mxu0 0.0
        %443 = vmatprep.subr.mxu0 0.0
        %444 = vmatpush1.msra.mxu0 0.0
        %445 = vmatprep.subr.mxu0 0.0
        %446 = vmatpush1.msra.mxu0 0.0
        %447 = vmatprep.subr.mxu0 0.0
        %448 = vmatpush1.msra.mxu0 0.0
        %449 = vmatprep.subr.mxu0 0.0
        %450 = vmatpush1.msra.mxu0 0.0
        %451 = vmatprep.subr.mxu0 0.0
        %452 = vmatpush1.msra.mxu0 0.0
        %453 = vmatprep.subr.mxu0 %v429
        %454 = vmatpush1.msra.mxu0 %v426
        %455 = vmatprep.subr.mxu0 %v417
        %456 = vmatpush1.msra.mxu0 %v416
        %457 = vmatprep.subr.mxu0 %v415
        %458 = vmatpush1.msra.mxu0 %v414
        %459 = vmatprep.subr.mxu0 %v413
        %460 = vmatpush1.msra.mxu0 %v412
        %461 = vmatprep.subr.mxu0 %v411
        %462 = vmatpush1.msra.mxu0 %v410
        %463 = vmatprep.subr.mxu0 0.0
        %464 = vmatpush2.msra.mxu0 0.0
        %465 = vmatprep.subr.mxu0 0.0
        %466 = vmatpush2.msra.mxu0 0.0
        %467 = vmatprep.subr.mxu0 0.0
        %468 = vmatpush2.msra.mxu0 0.0
        %469 = vmatprep.subr.mxu0 0.0
        %470 = vmatpush2.msra.mxu0 0.0
        %471 = vmatprep.subr.mxu0 0.0
        %472 = vmatpush2.msra.mxu0 0.0
        %473 = vmatprep.subr.mxu0 0.0
        %474 = vmatpush2.msra.mxu0 0.0
        %475 = vmatprep.subr.mxu0 0.0
        %476 = vmatpush2.msra.mxu0 0.0
        %477 = vmatprep.subr.mxu0 0.0
        %478 = vmatpush2.msra.mxu0 0.0
        %479 = vmatprep.subr.mxu0 0.0
        %480 = vmatpush2.msra.mxu0 0.0
        %481 = vmatprep.subr.mxu0 0.0
        %482 = vmatpush2.msra.mxu0 0.0
        %483 = vmatprep.subr.mxu0 0.0
        %484 = vmatpush2.msra.mxu0 0.0
        %485 = vmatprep.subr.mxu0 0.0
        %486 = vmatpush2.msra.mxu0 0.0
        %487 = vmatprep.subr.mxu0 0.0
        %488 = vmatpush2.msra.mxu0 0.0
        %489 = vmatprep.subr.mxu0 0.0
        %490 = vmatpush2.msra.mxu0 0.0
        %491 = vmatprep.subr.mxu0 0.0
        %492 = vmatpush2.msra.mxu0 0.0
        %493 = vmatprep.subr.mxu0 0.0
        %494 = vmatpush2.msra.mxu0 0.0
        %495 = vmatprep.mubr.f32.mxu0 0.0
        %496 = vmatmul.mubr.f32.gmra.mxu0 %v422
        %v497 = vpop.f32.mrf.mxu0
        %v498 = vadd.f32 0.0, %v497
        %v499 = vpop.f32.mrf.mxu0
        %v500 = vadd.f32 0.0, %v499
        %501 = vdwg.mxu0
        %v502 = vmax.f32 %v498, 0.0
        %v503 = vmax.f32 %v500, 0.0
        %504 = vst [vmem:[%s213] sm:$0xff] %v502
        %505 = vst [vmem:[%s213 + $0x8] sm:$0xff] %v503
        %s506 = sand.u32 %s97, 1
        %s507 = scalar_lea.sflag [#allocation5], %s506
        %s508 = sand.u32 %s97, 1
        %s509 = smul.addr %s508, 16
        %s510 = scalar_lea.vmem [#allocation9], %s509
        // Predicated region
        $region45: #{tpu_custom_call.1} parent=31 // pred_check
          %p511 = pneg %p107
        $region46: #{tpu_custom_call.1} parent=31 // pred_check_branch
          %513 = sbr.rel (%p511) target = $region48
        $region47: #{tpu_custom_call.1} parent=31 // pred_region
          %s515 = ssub.s32 256, 256
          %516 = vsyncadd %s507, %s515
          %s517 = smul.addr %s21, 2
          %s518 = smul.addr %s517, 128
          %s519 = scalar_lea.hbm %s3, %s518
          %s521 = sshll.u32 %s510, 4
          %s522 = int_to_ptr.vmem [resolvable:$true] %s521
          %524 = dma.vmem_to_hbm [thread:$0]  %s522, 256, %s519, %s507
        $region48: #{tpu_custom_call.1} parent=31 // pred_fallthru
          _
      $region32: #{tpu_custom_call.1} parent=5 // pred_fallthru
        _
      %p525 = scmp.le.s32.totalorder 2, %s16
      // Predicated region
      $region49: #{tpu_custom_call.1} parent=5 // pred_check
        %p526 = pneg %p525
      $region50: #{tpu_custom_call.1} parent=5 // pred_check_branch
        %528 = sbr.rel (%p526) target = $region52
      $region51: #{tpu_custom_call.1} parent=5 // pred_region
        %s529 = ssub.s32 %s16, 2
        // Predicated region
        $region53: #{tpu_custom_call.1} parent=51 // pred_check
          %p530 = pneg %p113
        $region54: #{tpu_custom_call.1} parent=51 // pred_check_branch
          %532 = sbr.rel (%p530) target = $region56
        $region55: #{tpu_custom_call.1} parent=51 // pred_region
          %s533 = sand.u32 %s98, 1
          %s534 = scalar_lea.sflag [#allocation5], %s533
          %s535 = sand.u32 %s98, 1
          %s536 = smul.addr %s535, 16
          %s537 = scalar_lea.vmem [#allocation9], %s536
          %538 = dma.done %s534, 256
        $region56: #{tpu_custom_call.1} parent=51 // pred_fallthru
          _
      $region52: #{tpu_custom_call.1} parent=5 // pred_fallthru
        _
    $region6: #{tpu_custom_call.1} parent=1 // loop_footer
      %s20 = sadd.s32 1, %s16
    $region7: #{tpu_custom_call.1} parent=1 // loop_footer_branch
      %15 = sbr.rel target = $region3
    $region8: #{tpu_custom_call.1} parent=1 // loop_exit
      _
    %539 = vsyncpa [#allocation4], 1
    %s540 = scalar_lea.sflag [#allocation4], 1
    %541 = vsyncpa %s540, 1
    %542 = vsyncpa [#allocation7], 1
    %543 = vsyncpa [#allocation5], 1
    %s544 = scalar_lea.sflag [#allocation5], 1
    %545 = vsyncpa %s544, 1

</llo_original>
